<compile_context>
chip_gen: v6e
topology: v6e:2x2x1
jax: 0.10.0
libtpu: 0.0.40
codegen_flags: <defaults>
</compile_context>

<pallas_src>
import functools
import math

import jax
import jax.numpy as jnp
from jax.experimental import pallas as pl
from jax.experimental.pallas import tpu as pltpu

_C0 = math.sqrt(2.0 / math.pi)
_C1 = 0.044715 * math.sqrt(2.0 / math.pi)
_LANE = 128
_ROW_ALIGN = 32  # sublane-aligned block rows for f32 (8), bf16 (16), int8/fp8 (32)


@functools.lru_cache(maxsize=None)
def _tuning():
    """(block_bytes, min_grid_steps, vmem_limit_bytes), tuned per TPU generation."""
    try:
        kind = jax.devices()[0].device_kind.lower()
    except Exception:  # pragma: no cover - defensive; fall back to safe defaults
        kind = ""
    if "v7" in kind:
        # 3.2 TB/s HBM: ~6 MiB blocks amortize the ~0.35 us/step overhead; the
        # two TensorCores want >= 8 grid steps to split between them.
        block_bytes, min_steps = 6 * 1024 * 1024, 8
    elif "v6" in kind:
        # ~85% of roofline already at 2 MiB; 4 MiB buys a few extra percent.
        block_bytes, min_steps = 4 * 1024 * 1024, 4
    else:
        # v5e (16 MiB default scoped VMEM) and unrecognized chips: conservative.
        block_bytes, min_steps = 2 * 1024 * 1024, 4
    # 2 arrays x 2 pipeline buffers x block, plus headroom for Mosaic scratch.
    vmem_limit = max(16 * 1024 * 1024, 4 * block_bytes + 8 * 1024 * 1024)
    return block_bytes, min_steps, vmem_limit


def _gelu_kernel(x_ref, o_ref):
    x = x_ref[...]
    # Cheap polynomial: keep it in bf16 when the input is bf16 (2x elements
    # per vreg on the v6e/v7x VALU); every other dtype upcasts to f32.
    xp = x if x.dtype == jnp.bfloat16 else x.astype(jnp.float32)
    x2 = xp * xp
    inner = xp * (_C0 + _C1 * x2)  # == sqrt(2/pi) * (x + 0.044715 * x^3)
    t = jnp.tanh(inner.astype(jnp.float32))  # EUP transcendental, f32 accuracy
    xf = x.astype(jnp.float32)
    # NOTE: on partial edge blocks the masked lanes/sublanes compute on stale
    # VMEM data; the masked store never writes them back, so this is harmless
    # for an elementwise op.
    o_ref[...] = (0.5 * xf * (1.0 + t)).astype(o_ref.dtype)


def _run_slab(slab: jax.Array) -> jax.Array:
    """Run the elementwise GeLU kernel over a contiguous 2D slab (rows, w)."""
    rows, w = slab.shape
    itemsize = jnp.dtype(slab.dtype).itemsize
    block_bytes, min_steps, vmem_limit = _tuning()

    # Size blocks by their VMEM footprint (lanes pad to a multiple of 128).
    row_bytes = pl.cdiv(w, _LANE) * _LANE * itemsize
    tr = max(_ROW_ALIGN, (block_bytes // row_bytes) // _ROW_ALIGN * _ROW_ALIGN)
    if tr >= rows:
        # At most ~1 block of work: one block spanning the full row extent.
        tr = rows
    else:
        # Keep the grid at least `min_steps` long so the software pipeline has
        # something to prefetch and (on v7x) both TensorCores get work.
        cap = pl.cdiv(pl.cdiv(rows, min_steps), _ROW_ALIGN) * _ROW_ALIGN
        tr = max(_ROW_ALIGN, min(tr, cap))

    grid = (pl.cdiv(rows, tr),)
    return pl.pallas_call(
        _gelu_kernel,
        out_shape=jax.ShapeDtypeStruct((rows, w), slab.dtype),
        grid_spec=pltpu.PrefetchScalarGridSpec(
            num_scalar_prefetch=0,
            grid=grid,
            in_specs=[pl.BlockSpec((tr, w), lambda i: (i, 0))],
            out_specs=pl.BlockSpec((tr, w), lambda i: (i, 0)),
        ),
        compiler_params=pltpu.CompilerParams(
            dimension_semantics=("parallel",),
            vmem_limit_bytes=vmem_limit,
        ),
    )(slab)


def _gelu_pallas_impl(x: jax.Array) -> jax.Array:
    """tanh-approx GeLU, elementwise, any shape / float dtype."""
    orig_shape = x.shape
    n = x.size
    if n == 0:
        return x
    itemsize = jnp.dtype(x.dtype).itemsize

    # Fast path: widest lane-dense last dim (multiple of 128) that divides n
    # exactly -> single free metadata reshape, tensor streams HBM exactly once.
    for cand in (4096, 2048, 1024, 512, 256, 128):
        if n % cand == 0:
            return _run_slab(x.reshape(n // cand, cand)).reshape(orig_shape)

    # Ragged path (n % 128 != 0): collapse trailing dims into a 2D slab (still
    # a free metadata reshape) and let Pallas mask the partial edge tiles.
    # No pad / slice / concat -> no extra HBM passes over the tensor.
    block_bytes, _, _ = _tuning()
    cap_elems = max(_LANE, block_bytes // (_ROW_ALIGN * itemsize))
    w = 0
    prod = 1
    for d in reversed(orig_shape):
        if prod * d > cap_elems:
            break
        prod *= d
        w = prod
    # Use the collapsed slab when it is lane-dense enough (w >= 128) or the
    # tensor is small enough that lane waste cannot matter.
    if w and (w >= _LANE or n * itemsize <= 4 * 1024 * 1024):
        return _run_slab(x.reshape(n // w, w)).reshape(orig_shape)

    # Last-resort fallback (pathological: large ragged tensor whose trailing
    # dims are all tiny, or a single giant ragged dim): pad to a lane boundary
    # and slice back.  gelu(0) == 0, so zero padding is numerically inert.
    n_pad = pl.cdiv(n, _LANE) * _LANE
    flat = jnp.pad(jnp.ravel(x), (0, n_pad - n))
    out = _run_slab(flat.reshape(n_pad // _LANE, _LANE))
    return out.reshape(-1)[:n].reshape(orig_shape)


# Jit the wrapper so the (metadata) reshapes fuse with the surrounding graph.
gelu_pallas = jax.jit(_gelu_pallas_impl)


def gelu_ref(x):
    xf = x.astype(jnp.float32)
    y = 0.5 * xf * (1.0 + jnp.tanh(_C0 * xf + _C1 * xf * xf * xf))
    return y.astype(x.dtype)


if __name__ == "__main__":
    key = jax.random.PRNGKey(0)
    # NCHW input, as the PyTorch module would typically receive.
    x = jax.random.normal(key, (2, 4, 16, 16), dtype=jnp.float32)
    y = gelu_pallas(x)
    jax.block_until_ready(y)
    y_ref = gelu_ref(x)
    assert y.shape == x.shape and y.dtype == x.dtype
    assert jnp.allclose(y, y_ref, atol=1e-5, rtol=1e-5)

    # Larger, tileable shape (exercises the multi-step pipelined grid).
    x2 = jax.random.normal(jax.random.PRNGKey(1), (8, 64, 32, 32), dtype=jnp.float32)
    y2 = gelu_pallas(x2)
    jax.block_until_ready(y2)
    assert jnp.allclose(y2, gelu_ref(x2), atol=1e-5, rtol=1e-5)

    # Ragged (non-128-multiple) shape -> copy-free collapsed-slab path.
    x3 = jax.random.normal(jax.random.PRNGKey(2), (3, 5, 7), dtype=jnp.float32)
    y3 = gelu_pallas(x3)
    jax.block_until_ready(y3)
    assert jnp.allclose(y3, gelu_ref(x3), atol=1e-5, rtol=1e-5)

    # bf16 input -> bf16-polynomial path (tolerance consistent with bf16 resolution).
    x4 = jax.random.normal(jax.random.PRNGKey(3), (2, 4, 16, 16), dtype=jnp.bfloat16)
    y4 = gelu_pallas(x4)
    jax.block_until_ready(y4)
    assert y4.shape == x4.shape and y4.dtype == jnp.bfloat16
    assert jnp.allclose(y4.astype(jnp.float32), gelu_ref(x4).astype(jnp.float32),
                        atol=5e-2, rtol=5e-2)

    print("KERNEL_OK")
</pallas_src>

<mosaic_0001>
module attributes {stable_mosaic.version = 11 : i64} {
  func.func @_gelu_kernel(%arg0: i32, %arg1: memref<1x2048xf32, #tpu.memory_space<vmem>>, %arg2: memref<1x2048xf32, #tpu.memory_space<vmem>>) attributes {dimension_semantics = [#tpu.dimension_semantics<parallel>], iteration_bounds = array<i64: 1>, scalar_prefetch = 0 : i64, scratch_operands = 0 : i64, tpu.core_type = #tpu.core_type<tc>, window_params = [{transform_indices = @transform_0, window_bounds = array<i64: 1, 2048>}, {transform_indices = @transform_1, window_bounds = array<i64: 1, 2048>}]} {
    %c0 = arith.constant 0 : index
    %c0_0 = arith.constant 0 : index
    %0 = vector.load %arg1[%c0, %c0_0] : memref<1x2048xf32, #tpu.memory_space<vmem>>, vector<1x2048xf32>
    %1 = arith.mulf %0, %0 : vector<1x2048xf32>
    %cst = arith.constant 0.0356774069 : f32
    %2 = vector.broadcast %cst : f32 to vector<1x2048xf32>
    %3 = arith.mulf %2, %1 : vector<1x2048xf32>
    %cst_1 = arith.constant 0.797884583 : f32
    %4 = vector.broadcast %cst_1 : f32 to vector<1x2048xf32>
    %5 = arith.addf %4, %3 : vector<1x2048xf32>
    %6 = arith.mulf %0, %5 : vector<1x2048xf32>
    %7 = math.tanh %6 : vector<1x2048xf32>
    %cst_2 = arith.constant 5.000000e-01 : f32
    %8 = vector.broadcast %cst_2 : f32 to vector<1x2048xf32>
    %9 = arith.mulf %8, %0 : vector<1x2048xf32>
    %cst_3 = arith.constant 1.000000e+00 : f32
    %10 = vector.broadcast %cst_3 : f32 to vector<1x2048xf32>
    %11 = arith.addf %10, %7 : vector<1x2048xf32>
    %12 = arith.mulf %9, %11 : vector<1x2048xf32>
    %c0_4 = arith.constant 0 : index
    %c0_5 = arith.constant 0 : index
    %13 = vector.load %arg2[%c0_4, %c0_5] : memref<1x2048xf32, #tpu.memory_space<vmem>>, vector<1x2048xf32>
    tpu.vector_store %arg2[%c0_4, %c0_5], %12 {strides = array<i32>} : memref<1x2048xf32, #tpu.memory_space<vmem>>, vector<1x2048xf32>,
    return
  }
  func.func @transform_0(%arg0: i32) -> (i32, i32) {
    %c0_i32 = arith.constant 0 : i32
    %c0_i32_0 = arith.constant 0 : i32
    return %arg0, %c0_i32 : i32, i32
  }
  func.func @transform_1(%arg0: i32) -> (i32, i32) {
    %c0_i32 = arith.constant 0 : i32
    %c0_i32_0 = arith.constant 0 : i32
    return %arg0, %c0_i32 : i32, i32
  }
}

</mosaic_0001>

<llo_original>
// kernel: _gelu_pallas_impl.1
$region0: #{_gelu_pallas_impl.1}
  #allocation0 [shape = 'u32[]', space=smem, size = 0x4, offset = 0x4, fixed_abs, tag = 'smem constant byte address 0x4 - core index']
  #allocation1 [shape = 'u32[144,128]{1,0:T(1,128)}', space=vmem, size = 0x12000, scoped, tag = 'internal scratch']
  %s0 = inlined_call_operand.vmem [shape: f32[1,2048], index: 0, kind: input, shape index: {}]
  %s1 = inlined_call_operand.vmem [shape: f32[1,2048], index: 1, kind: output, shape index: {}]
  %s2 = sld [smem:[#allocation0]]
  $region14: #{_gelu_pallas_impl.1} parent=0
    _
  %s4 = ssub.s32 1, %s2
  %s5 = scalar_select 0, %s4, %s2
  // Predicated region
  $region2: #{_gelu_pallas_impl.1} parent=0 // pred_check
    _
  $region3: #{_gelu_pallas_impl.1} parent=0 // pred_check_branch
    %7 = sbr.rel (0) target = $region5
  $region4: #{_gelu_pallas_impl.1} parent=0 // pred_region
    _
  $region5: #{_gelu_pallas_impl.1} parent=0 // pred_fallthru
    _
  %v8 = vld [vmem:[%s0] sm:$0xff]
  %v9 = vld [vmem:[%s0 + $0x8] sm:$0xff]
  %v10 = vmul.f32 %v8, %v8
  %v11 = vmul.f32 %v9, %v9
  %v12 = vmul.f32 %v10, 0.035677407
  %v13 = vmul.f32 %v11, 0.035677407
  %v14 = vadd.f32 %v12, 0.7978846
  %v15 = vadd.f32 %v13, 0.7978846
  %v16 = vmul.f32 %v8, %v14
  %v17 = vmul.f32 %v9, %v15
  %v18 = vtanh.pop %v16
  %v19 = vtanh.pop %v17
  %v20 = vmul.f32 %v8, 0.5
  %v21 = vmul.f32 %v9, 0.5
  %v22 = vadd.f32 %v18, 1.0
  %v23 = vadd.f32 %v19, 1.0
  %v24 = vmul.f32 %v20, %v22
  %v25 = vmul.f32 %v21, %v23
  %26 = vst [vmem:[%s1] sm:$0xff] %v24
  %27 = vst [vmem:[%s1 + $0x8] sm:$0xff] %v25
  // Predicated region
  $region6: #{_gelu_pallas_impl.1} parent=0 // pred_check
    _
  $region7: #{_gelu_pallas_impl.1} parent=0 // pred_check_branch
    %29 = sbr.rel (0) target = $region9
  $region8: #{_gelu_pallas_impl.1} parent=0 // pred_region
    _
  $region9: #{_gelu_pallas_impl.1} parent=0 // pred_fallthru
    _
  // Predicated region
  $region10: #{_gelu_pallas_impl.1} parent=0 // pred_check
    _
  $region11: #{_gelu_pallas_impl.1} parent=0 // pred_check_branch
    %31 = sbr.rel (0) target = $region13
  $region12: #{_gelu_pallas_impl.1} parent=0 // pred_region
    _
  $region13: #{_gelu_pallas_impl.1} parent=0 // pred_fallthru
    _

</llo_original>
